<compile_context>
chip_gen: v7x
topology: tpu7x:2x2x1
jax: 0.10.0
libtpu: 0.0.40
codegen_flags: <defaults>
</compile_context>

<pallas_src>
import functools

import jax
import jax.numpy as jnp
import numpy as np
from jax import lax
from jax.experimental import pallas as pl
from jax.experimental.pallas import tpu as pltpu


def _time_reduction_kernel(lens_ref, x_ref, w_ref, b_ref, o_ref, *,
                           bb_blk, batch, channel, stride, n_q, t_out, t_cmp,
                           l_out):
    """One grid step: Bb batch rows, full (phase-merged) time extent.

    lens_ref: (B,)                int32, SMEM (scalar prefetch)
    x_ref:    (Bb, L_in, stride*C) phase-merged activations, native dtype
    w_ref:    (n_q, stride*C, D)   folded depthwise*pointwise weights, xs dtype
    b_ref:    (1, D)               folded bias, float32
    o_ref:    (Bb, L, D)
    """
    l_in = x_ref.shape[1]
    k_dim = x_ref.shape[2]
    d_out = w_ref.shape[2]
    b0 = pl.program_id(0) * bb_blk

    # masked_fill: zero every input frame t >= xs_lens[b], once per grid step.
    # Element (row, lane) of the merged layout holds original frame
    # row*stride + phase(lane); build phase via compares (no integer divide).
    row = lax.broadcasted_iota(jnp.int32, (1, l_in, k_dim), 1)
    lane = lax.broadcasted_iota(jnp.int32, (1, l_in, k_dim), 2)
    phase = jnp.zeros_like(lane)
    for r in range(1, stride):
        phase = phase + (lane >= r * channel).astype(jnp.int32)
    frame = row * stride + phase                                    # (1, L_in, K)

    # Per-row lengths from SMEM (index clamped for the partial batch tail block;
    # those rows' writes are dropped by Pallas anyway).
    lens = jnp.concatenate(
        [jnp.full((1, 1, 1), lens_ref[jnp.minimum(b0 + i, batch - 1)], jnp.int32)
         for i in range(bb_blk)], axis=0)                           # (Bb, 1, 1)

    x = x_ref[...]
    x = jnp.where(frame < lens, x, jnp.zeros_like(x))

    # One MXU matmul per phase group over all Bb rows at once.  t_cmp is a
    # multiple of 8, so the (Bb, t_cmp, K) -> (Bb*t_cmp, K) collapse is
    # layout-free; rows [t_out, t_cmp) are never stored.
    acc = jnp.zeros((bb_blk * t_cmp, d_out), jnp.float32)
    for q in range(n_q):
        lhs = x[:, q:q + t_cmp, :].reshape(bb_blk * t_cmp, k_dim)
        acc = acc + jnp.dot(lhs, w_ref[q], preferred_element_type=jnp.float32)

    y = (acc + b_ref[...]).astype(o_ref.dtype).reshape(bb_blk, t_cmp, d_out)

    o_ref[:, :t_out, :] = y[:, :t_out, :]
    if l_out > t_out:
        # torch's `dummy_pad` rows, written once per grid step (not per row).
        o_ref[:, t_out:, :] = jnp.zeros((bb_blk, l_out - t_out, d_out), o_ref.dtype)


def _pick_bb(batch, bytes_per_row):
    budget = 48 << 20                      # fits v7x's 64 MiB physical VMEM
    bb_mem = max(1, budget // max(bytes_per_row, 1))
    if batch == 1:
        return 1
    # >= 2 steps on the parallel grid axis so v7x's two TensorCores both work.
    bb = min(8, (batch + 1) // 2, bb_mem, batch)
    return max(1, bb)


def time_reduction_layer_stream(xs, xs_lens, mask, mask_pad, params,
                                kernel_size=1, stride=2):
    B, T, C = xs.shape
    assert T >= kernel_size, "TimeReductionLayerStream needs T >= kernel_size"
    dw_w, dw_b, pw_w, pw_b = params["dw_w"], params["dw_b"], params["pw_w"], params["pw_b"]
    out_dim = pw_w.shape[0]

    L = -(-T // stride)                        # ceil(T/stride) == mask_pad[:, :, ::stride] width
    T_out = (T - kernel_size) // stride + 1    # valid conv output rows; always <= L
    n_q = -(-kernel_size // stride)            # phase groups
    q_max = n_q - 1
    t_cmp = -(-T_out // 8) * 8                 # sublane-aligned compute rows
    L_in = max(L, q_max + t_cmp)               # merged input rows per batch
    K = stride * C

    # Output lane width: write out_dim directly when small (avoid padded HBM
    # writes + a re-slice pass); only pad to 128 for large misaligned out_dim.
    if out_dim % 128 == 0 or out_dim < 128:
        D_p = out_dim
    else:
        D_p = ((out_dim + 127) // 128) * 128

    # Fold depthwise (per-channel scale + bias) into the pointwise matmul and
    # pack per phase group for the merged layout.
    pw_wT = jnp.transpose(pw_w[:, :, 0], (1, 0)).astype(jnp.float32)      # (C, D)
    dw_taps = jnp.transpose(dw_w[:, 0, :], (1, 0)).astype(jnp.float32)    # (k, C)
    w_eff = dw_taps[:, :, None] * pw_wT[None, :, :]                       # (k, C, D)
    b_eff = (dw_b.astype(jnp.float32) @ pw_wT
             + pw_b.astype(jnp.float32))[None, :]                         # (1, D)
    w_merged = jnp.zeros((n_q, K, D_p), jnp.float32)
    for j in range(kernel_size):
        q, r = divmod(j, stride)
        w_merged = w_merged.at[q, r * C:(r + 1) * C, :out_dim].set(w_eff[j])
    w_merged = w_merged.astype(xs.dtype)       # native-dtype MXU matmul (bf16 if xs bf16)
    if D_p != out_dim:
        b_eff = jnp.pad(b_eff, ((0, 0), (0, D_p - out_dim)))

    # Phase-merge the time axis: (B, T, C) -> (B, L_in, stride*C).
    # The reshape is free (contiguous memory); the zero-pad only copies when
    # T < L_in*stride, and the padded frames are masked / read only by unstored rows.
    T_pad = L_in * stride
    x_m = xs if T_pad == T else jnp.pad(xs, ((0, 0), (0, T_pad - T), (0, 0)))
    x_m = x_m.reshape(B, L_in, K)

    in_it = jnp.dtype(xs.dtype).itemsize
    bytes_per_row = (3 * L_in * K * in_it          # input block (x2 pipeline) + masked copy
                     + 2 * L * D_p * in_it         # output block (x2 pipeline)
                     + t_cmp * D_p * 4)            # f32 accumulator
    Bb = _pick_bb(B, bytes_per_row)
    n_steps = pl.cdiv(B, Bb)

    weight_bytes = 2 * n_q * K * D_p * in_it + 2 * D_p * 4
    vmem_est = Bb * bytes_per_row + weight_bytes + (2 << 20)
    vmem_limit = int(min(max(vmem_est, 32 << 20), 64 << 20))

    # TODO(synk): for very long T, add a halo time-tiled grid axis (index_map over
    # merged rows) instead of one full-L_in block per step.
    kernel = functools.partial(
        _time_reduction_kernel, bb_blk=Bb, batch=B, channel=C, stride=stride,
        n_q=n_q, t_out=T_out, t_cmp=t_cmp, l_out=L)

    out = pl.pallas_call(
        kernel,
        out_shape=jax.ShapeDtypeStruct((B, L, D_p), xs.dtype),
        grid_spec=pltpu.PrefetchScalarGridSpec(
            num_scalar_prefetch=1,
            grid=(n_steps,),
            in_specs=[
                pl.BlockSpec((Bb, L_in, K), lambda b, lens: (b, 0, 0)),
                # TODO(synk): mark the constant-index weight block single-buffered
                # once pipeline_mode=pl.Buffered(1) is universally supported.
                pl.BlockSpec((n_q, K, D_p), lambda b, lens: (0, 0, 0)),
                pl.BlockSpec((1, D_p), lambda b, lens: (0, 0)),
            ],
            out_specs=pl.BlockSpec((Bb, L, D_p), lambda b, lens: (b, 0, 0)),
        ),
        compiler_params=pltpu.CompilerParams(
            dimension_semantics=("parallel",),
            vmem_limit_bytes=vmem_limit),
    )(xs_lens.astype(jnp.int32), x_m, w_merged, b_eff)

    if D_p != out_dim:
        # TODO(synk): let the consumer read the padded layout to skip this pass.
        out = out[..., :out_dim]

    # Glue: mask / mask_pad stride-slicing and length update stay in plain JAX.
    new_mask = mask[:, ::stride, ::stride]
    new_mask_pad = mask_pad[:, :, ::stride]
    # torch hardcodes div-by-2 regardless of `stride`; replicate faithfully.
    new_lens = (xs_lens + 1) // 2
    # TODO(synk): the kernel derives masked_fill from xs_lens; it assumes
    # mask_pad[b, 0, t] == (t < xs_lens[b]) as produced by make_pad_mask.
    return out, new_lens, new_mask, new_mask_pad


def init_params(key, channel, out_dim, kernel_size):
    # matches TimeReductionLayerStream.init_weights (uniform ranges), deterministic
    dw_max = kernel_size ** (-0.5)
    pw_max = channel ** (-0.5)
    k1, k2, k3, k4 = jax.random.split(key, 4)
    return {
        "dw_w": jax.random.uniform(k1, (channel, 1, kernel_size), jnp.float32, -dw_max, dw_max),
        "dw_b": jax.random.uniform(k2, (channel,), jnp.float32, -dw_max, dw_max),
        "pw_w": jax.random.uniform(k3, (out_dim, channel, 1), jnp.float32, -pw_max, pw_max),
        "pw_b": jax.random.uniform(k4, (out_dim,), jnp.float32, -pw_max, pw_max),
    }


def reference_forward(xs, xs_lens, mask, mask_pad, params, kernel_size, stride):
    # pure-JAX reference reproducing the torch forward exactly
    x = jnp.transpose(xs, (0, 2, 1)).astype(jnp.float32)     # (B, C, T)
    x = jnp.where(mask_pad == 0, 0.0, x)
    B, C, T = x.shape
    T_out = (T - kernel_size) // stride + 1
    y = jnp.zeros((B, C, T_out), jnp.float32)
    for j in range(kernel_size):
        xj = jax.lax.slice(x, (0, 0, j), (B, C, j + (T_out - 1) * stride + 1), (1, 1, stride))
        y = y + xj * params["dw_w"][None, :, 0, j][..., None]
    y = y + params["dw_b"][None, :, None]
    z = jnp.einsum("bct,dc->bdt", y, params["pw_w"][:, :, 0]) + params["pw_b"][None, :, None]
    z = jnp.transpose(z, (0, 2, 1))                          # (B, T_out, out_dim)
    L = mask_pad[:, :, ::stride].shape[-1]
    if L - T_out < 0:
        z = z[:, :L, :]
    else:
        z = jnp.concatenate([z, jnp.zeros((B, L - T_out, z.shape[-1]), z.dtype)], axis=1)
    return z


def _make_inputs(key, B, T, C, out_dim, kernel_size, lens_list, dtype):
    kp, kx = jax.random.split(key)
    params = init_params(kp, C, out_dim, kernel_size)
    xs = jax.random.normal(kx, (B, T, C), jnp.float32).astype(dtype)
    xs_lens = jnp.array(lens_list, dtype=jnp.int32)
    t_idx = jnp.arange(T)
    valid = t_idx[None, :] < xs_lens[:, None]                # (B, T)
    mask_pad = valid[:, None, :]                             # (B, 1, T) bool
    mask = valid[:, :, None] & valid[:, None, :]             # (B, T, T) bool
    return xs, xs_lens, mask, mask_pad, params


if __name__ == "__main__":
    key = jax.random.PRNGKey(0)
    configs = [
        # (B, T, channel, out_dim, kernel_size, stride, lens, dtype, rtol, atol)
        (2, 16, 8, 16, 3, 2, [16, 11], jnp.float32, 1e-5, 1e-5),
        (4, 15, 16, 24, 1, 2, [15, 9, 4, 12], jnp.float32, 1e-5, 1e-5),
        (3, 20, 16, 32, 3, 2, [20, 13, 7], jnp.bfloat16, 5e-2, 5e-2),
    ]
    for (B, T, C, out_dim, ks, st, lens, dtype, rtol, atol) in configs:
        key, sub = jax.random.split(key)
        xs, xs_lens, mask, mask_pad, params = _make_inputs(sub, B, T, C, out_dim, ks, lens, dtype)

        out, new_lens, new_mask, new_mask_pad = time_reduction_layer_stream(
            xs, xs_lens, mask, mask_pad, params, ks, st)
        out = jax.block_until_ready(out)

        ref = reference_forward(xs, xs_lens, mask, mask_pad, params, ks, st)
        np.testing.assert_allclose(np.asarray(out, dtype=np.float32),
                                   np.asarray(ref, dtype=np.float32),
                                   rtol=rtol, atol=atol)
        assert np.array_equal(np.asarray(new_lens), np.asarray((xs_lens + 1) // 2))
        Lc = (T + st - 1) // st
        assert new_mask.shape == (B, Lc, Lc)
        assert new_mask_pad.shape == (B, 1, Lc)

    print("KERNEL_OK")
</pallas_src>

<mosaic_0001>
module attributes {stable_mosaic.version = 11 : i64} {
  func.func @_time_reduction_kernel(%arg0: i32, %arg1: memref<2xi32, #tpu.memory_space<smem>>, %arg2: memref<1x9x16xf32, #tpu.memory_space<vmem>>, %arg3: memref<2x16x16xf32, #tpu.memory_space<vmem>>, %arg4: memref<1x16xf32, #tpu.memory_space<vmem>>, %arg5: memref<1x8x16xf32, #tpu.memory_space<vmem>>) attributes {dimension_semantics = [#tpu.dimension_semantics<parallel>], iteration_bounds = array<i64: 2>, scalar_prefetch = 1 : i64, scratch_operands = 0 : i64, tpu.core_type = #tpu.core_type<tc>, window_params = [{transform_indices = @transform_0, window_bounds = array<i64: 1, 9, 16>}, {pipeline_mode = #tpu.pipeline_mode<synchronous>, transform_indices = @transform_1, window_bounds = array<i64: 2, 16, 16>}, {pipeline_mode = #tpu.pipeline_mode<synchronous>, transform_indices = @transform_2, window_bounds = array<i64: 1, 16>}, {transform_indices = @transform_3, window_bounds = array<i64: 1, 8, 16>}]} {
    %c1_i32 = arith.constant 1 : i32
    %0 = arith.muli %arg0, %c1_i32 : i32
    %1 = tpu.iota {dimensions = array<i32: 1>} : vector<1x9x16xi32>
    %2 = tpu.iota {dimensions = array<i32: 2>} : vector<1x9x16xi32>
    %c0_i32 = arith.constant 0 : i32
    %3 = vector.broadcast %c0_i32 : i32 to vector<1x9x16xi32>
    %c8_i32 = arith.constant 8 : i32
    %4 = vector.broadcast %c8_i32 : i32 to vector<1x9x16xi32>
    %5 = arith.cmpi sge, %2, %4 : vector<1x9x16xi32>
    %6 = arith.extui %5 : vector<1x9x16xi1> to vector<1x9x16xi32>
    %7 = arith.addi %3, %6 : vector<1x9x16xi32>
    %c2_i32 = arith.constant 2 : i32
    %8 = vector.broadcast %c2_i32 : i32 to vector<1x9x16xi32>
    %9 = arith.muli %1, %8 : vector<1x9x16xi32>
    %10 = arith.addi %9, %7 : vector<1x9x16xi32>
    %c0_i32_0 = arith.constant 0 : i32
    %11 = arith.addi %0, %c0_i32_0 : i32
    %c1_i32_1 = arith.constant 1 : i32
    %12 = arith.minsi %11, %c1_i32_1 : i32
    %13 = arith.index_cast %12 : i32 to index
    %14 = memref.load %arg1[%13] : memref<2xi32, #tpu.memory_space<smem>>
    %15 = vector.broadcast %14 : i32 to vector<1x1x1xi32>
    %c0 = arith.constant 0 : index
    %c0_2 = arith.constant 0 : index
    %c0_3 = arith.constant 0 : index
    %16 = vector.load %arg2[%c0, %c0_2, %c0_3] : memref<1x9x16xf32, #tpu.memory_space<vmem>>, vector<1x9x16xf32>
    %17 = vector.broadcast %15 : vector<1x1x1xi32> to vector<1x9x16xi32>
    %18 = arith.cmpi slt, %10, %17 : vector<1x9x16xi32>
    %cst = arith.constant 0.000000e+00 : f32
    %19 = vector.broadcast %cst : f32 to vector<1x9x16xf32>
    %20 = arith.select %18, %16, %19 : vector<1x9x16xi1>, vector<1x9x16xf32>
    %cst_4 = arith.constant 0.000000e+00 : f32
    %21 = vector.broadcast %cst_4 : f32 to vector<8x16xf32>
    %22 = vector.extract_strided_slice %20 {offsets = [0, 0, 0], sizes = [1, 8, 16], strides = [1, 1, 1]} : vector<1x9x16xf32> to vector<1x8x16xf32>
    %23 = vector.shape_cast %22 : vector<1x8x16xf32> to vector<8x16xf32>
    %c0_5 = arith.constant 0 : index
    %c0_6 = arith.constant 0 : index
    %c0_7 = arith.constant 0 : index
    %24 = vector.load %arg3[%c0_5, %c0_6, %c0_7] : memref<2x16x16xf32, #tpu.memory_space<vmem>>, vector<1x16x16xf32>
    %25 = vector.shape_cast %24 : vector<1x16x16xf32> to vector<16x16xf32>
    %cst_8 = arith.constant dense<0.000000e+00> : vector<8x16xf32>
    %26 = tpu.matmul %23, %25, %cst_8 {dimension_numbers = #tpu.dot_dimension_numbers<[1], [0], [0], [1], [0, 0, 1, 1], [], []>} : vector<8x16xf32>, vector<16x16xf32>, vector<8x16xf32> -> vector<8x16xf32>
    %27 = arith.addf %21, %26 : vector<8x16xf32>
    %28 = vector.extract_strided_slice %20 {offsets = [0, 1, 0], sizes = [1, 8, 16], strides = [1, 1, 1]} : vector<1x9x16xf32> to vector<1x8x16xf32>
    %29 = vector.shape_cast %28 : vector<1x8x16xf32> to vector<8x16xf32>
    %c1 = arith.constant 1 : index
    %c0_9 = arith.constant 0 : index
    %c0_10 = arith.constant 0 : index
    %30 = vector.load %arg3[%c1, %c0_9, %c0_10] : memref<2x16x16xf32, #tpu.memory_space<vmem>>, vector<1x16x16xf32>
    %31 = vector.shape_cast %30 : vector<1x16x16xf32> to vector<16x16xf32>
    %cst_11 = arith.constant dense<0.000000e+00> : vector<8x16xf32>
    %32 = tpu.matmul %29, %31, %cst_11 {dimension_numbers = #tpu.dot_dimension_numbers<[1], [0], [0], [1], [0, 0, 1, 1], [], []>} : vector<8x16xf32>, vector<16x16xf32>, vector<8x16xf32> -> vector<8x16xf32>
    %33 = arith.addf %27, %32 : vector<8x16xf32>
    %c0_12 = arith.constant 0 : index
    %c0_13 = arith.constant 0 : index
    %34 = vector.load %arg4[%c0_12, %c0_13] : memref<1x16xf32, #tpu.memory_space<vmem>>, vector<1x16xf32>
    %35 = vector.broadcast %34 : vector<1x16xf32> to vector<8x16xf32>
    %36 = arith.addf %33, %35 : vector<8x16xf32>
    %37 = vector.shape_cast %36 : vector<8x16xf32> to vector<1x8x16xf32>
    %38 = vector.extract_strided_slice %37 {offsets = [0, 0, 0], sizes = [1, 7, 16], strides = [1, 1, 1]} : vector<1x8x16xf32> to vector<1x7x16xf32>
    %c0_14 = arith.constant 0 : index
    %c0_15 = arith.constant 0 : index
    %c0_16 = arith.constant 0 : index
    %39 = vector.load %arg5[%c0_14, %c0_15, %c0_16] : memref<1x8x16xf32, #tpu.memory_space<vmem>>, vector<1x7x16xf32>
    tpu.vector_store %arg5[%c0_14, %c0_15, %c0_16], %38 {strides = array<i32>} : memref<1x8x16xf32, #tpu.memory_space<vmem>>, vector<1x7x16xf32>,
    %cst_17 = arith.constant 0.000000e+00 : f32
    %40 = vector.broadcast %cst_17 : f32 to vector<1x1x16xf32>
    %c0_18 = arith.constant 0 : index
    %c7 = arith.constant 7 : index
    %c0_19 = arith.constant 0 : index
    %41 = vector.load %arg5[%c0_18, %c7, %c0_19] : memref<1x8x16xf32, #tpu.memory_space<vmem>>, vector<1x1x16xf32>
    tpu.vector_store %arg5[%c0_18, %c7, %c0_19], %40 {strides = array<i32>} : memref<1x8x16xf32, #tpu.memory_space<vmem>>, vector<1x1x16xf32>,
    return
  }
  func.func @transform_0(%arg0: i32, %arg1: memref<2xi32, #tpu.memory_space<smem>>) -> (i32, i32, i32) {
    %c0_i32 = arith.constant 0 : i32
    %c0_i32_0 = arith.constant 0 : i32
    %c0_i32_1 = arith.constant 0 : i32
    return %arg0, %c0_i32, %c0_i32_0 : i32, i32, i32
  }
  func.func @transform_1(%arg0: i32, %arg1: memref<2xi32, #tpu.memory_space<smem>>) -> (i32, i32, i32) {
    %c0_i32 = arith.constant 0 : i32
    %c0_i32_0 = arith.constant 0 : i32
    %c0_i32_1 = arith.constant 0 : i32
    %c0_i32_2 = arith.constant 0 : i32
    return %c0_i32, %c0_i32_0, %c0_i32_1 : i32, i32, i32
  }
  func.func @transform_2(%arg0: i32, %arg1: memref<2xi32, #tpu.memory_space<smem>>) -> (i32, i32) {
    %c0_i32 = arith.constant 0 : i32
    %c0_i32_0 = arith.constant 0 : i32
    %c0_i32_1 = arith.constant 0 : i32
    return %c0_i32, %c0_i32_0 : i32, i32
  }
  func.func @transform_3(%arg0: i32, %arg1: memref<2xi32, #tpu.memory_space<smem>>) -> (i32, i32, i32) {
    %c0_i32 = arith.constant 0 : i32
    %c0_i32_0 = arith.constant 0 : i32
    %c0_i32_1 = arith.constant 0 : i32
    return %arg0, %c0_i32, %c0_i32_0 : i32, i32, i32
  }
}

</mosaic_0001>

<llo_original>
// kernel: tpu_custom_call.1
$region0: #{tpu_custom_call.1}
  #allocation0 [shape = 'u32[]', space=smem, size = 0x4, offset = 0x4, fixed_abs, tag = 'smem constant byte address 0x4 - core index']
  #allocation1 [shape = 'u32[144,128]{1,0:T(1,128)}', space=vmem, size = 0x12000, scoped, tag = 'internal scratch']
  #allocation2 [shape = 's32[1]{0}', space=sflag, size = 0x4, scoped, tag = 'scoped memory for tpu_custom_call.1']
  #allocation3 [shape = 'u8[512]{0}', space=smem, size = 0x200, scoped, tag = 'prefetched SMEM operand 0']
  %s0 = inlined_call_operand.vmem [shape: s32[2], index: 0, kind: input, shape index: {}]
  %s1 = inlined_call_operand.vmem [shape: f32[2,9,16], index: 1, kind: input, shape index: {}]
  %s2 = inlined_call_operand.vmem [shape: f32[2,16,16], index: 2, kind: input, shape index: {}]
  %s3 = inlined_call_operand.vmem [shape: f32[1,16], index: 3, kind: input, shape index: {}]
  %s4 = inlined_call_operand.hbm [shape: f32[2,8,16], index: 4, kind: output, shape index: {}]
  %s5 = sld [smem:[#allocation0]]
  $region45: #{tpu_custom_call.1} parent=0
    _
  %s7 = ssub.s32 1, %s5
  %s8 = scalar_select 0, %s7, %s5
  %s9 = sshll.u32 %s0, 4
  %s10 = int_to_ptr.vmem [resolvable:$true] %s9
  %12 = dma.vmem_to_smem %s10, 16, [#allocation3], [#allocation2]
  %13 = dma.done [#allocation2], 16
  %14 = sfence
  $region1: #{tpu_custom_call.1} parent=0
    #allocation4 [shape = 'u8[8192]{0}', space=vmem, size = 0x2000, scoped, tag = 'output window, operand 0']
    #allocation5 [shape = 's32[2]{0}', space=sflag, size = 0x8, scoped, tag = 'scoped memory for tpu_custom_call.1']
    %15 = vsyncpa [#allocation5], 0
    %s16 = scalar_lea.sflag [#allocation5], 1
    %17 = vsyncpa %s16, 0
    loop: start=0, step=1, limit=4
    $region2: #{tpu_custom_call.1} parent=1 // loop_pre_header
      _
    $region3: #{tpu_custom_call.1} parent=1 // loop_header
      %s19 = sphi 0, %s23
      %p20 = scmp.ge.s32.totalorder %s19, 4
      %s29 = sphi 0, %s31
      %s32 = sphi 0, %s29
      %s33 = sphi 0, %s32
      %s49 = sphi 0, %s33
      %s53 = sphi 0, %s53
      %s55 = sphi 0, %s53
      %s56 = sphi 0, %s55
      %s70 = sphi 0, %s56
      %s74 = sphi 0, %s74
      %s76 = sphi 0, %s74
      %s77 = sphi 0, %s76
      %s91 = sphi 0, %s77
      %s97 = sphi 0, %s99
      %s100 = sphi 0, %s97
      %s101 = sphi 0, %s100
      %s117 = sphi 0, %s101
    $region4: #{tpu_custom_call.1} parent=1 // loop_header_branch
      %22 = sbr.rel (%p20) target = $region8
    $region5: #{tpu_custom_call.1} parent=1 // loop_body
      %s24 = ssub.s32 %s19, 1
      %s25 = ssub.s32 %s19, 2
      %s26 = sadd.s32 %s19, 1
      %s27 = ssub.s32 %s19, %s26
      %p28 = scmp.eq.s32.totalorder %s27, 0
      %s30 = sadd.s32 %s29, 1
      %s31 = scalar_select %p28, %s29, %s30
      %p34 = pneg %p28
      %p35 = scmp.eq.s32.totalorder %s19, 1
      %p36 = por %p34, %p35
      %p37 = scmp.ne.s32.totalorder %s29, %s32
      %p38 = scmp.eq.s32.totalorder %s19, 0
      %p39 = por %p37, %p38
      %p40 = scmp.ne.s32.totalorder %s29, %s32
      %p41 = scmp.eq.s32.totalorder %s24, 1
      %p42 = por %p40, %p41
      %p43 = scmp.ne.s32.totalorder %s32, %s33
      %p44 = scmp.eq.s32.totalorder %s24, 0
      %p45 = por %p43, %p44
      %p46 = scmp.ne.s32.totalorder %s32, %s33
      %p47 = scmp.eq.s32.totalorder %s25, 1
      %p48 = por %p46, %p47
      %p50 = scmp.ne.s32.totalorder %s33, %s49
      %p51 = scmp.eq.s32.totalorder %s25, 0
      %p52 = por %p50, %p51
      %s54 = sadd.s32 %s53, 1
      %p57 = scmp.eq.s32.totalorder %s19, 1
      %p58 = scmp.ne.s32.totalorder %s53, %s55
      %p59 = scmp.eq.s32.totalorder %s19, 0
      %p60 = por %p58, %p59
      %p61 = scmp.ne.s32.totalorder %s53, %s55
      %p62 = scmp.eq.s32.totalorder %s24, 1
      %p63 = por %p61, %p62
      %p64 = scmp.ne.s32.totalorder %s55, %s56
      %p65 = scmp.eq.s32.totalorder %s24, 0
      %p66 = por %p64, %p65
      %p67 = scmp.ne.s32.totalorder %s55, %s56
      %p68 = scmp.eq.s32.totalorder %s25, 1
      %p69 = por %p67, %p68
      %p71 = scmp.ne.s32.totalorder %s56, %s70
      %p72 = scmp.eq.s32.totalorder %s25, 0
      %p73 = por %p71, %p72
      %s75 = sadd.s32 %s74, 1
      %p78 = scmp.eq.s32.totalorder %s19, 1
      %p79 = scmp.ne.s32.totalorder %s74, %s76
      %p80 = scmp.eq.s32.totalorder %s19, 0
      %p81 = por %p79, %p80
      %p82 = scmp.ne.s32.totalorder %s74, %s76
      %p83 = scmp.eq.s32.totalorder %s24, 1
      %p84 = por %p82, %p83
      %p85 = scmp.ne.s32.totalorder %s76, %s77
      %p86 = scmp.eq.s32.totalorder %s24, 0
      %p87 = por %p85, %p86
      %p88 = scmp.ne.s32.totalorder %s76, %s77
      %p89 = scmp.eq.s32.totalorder %s25, 1
      %p90 = por %p88, %p89
      %p92 = scmp.ne.s32.totalorder %s77, %s91
      %p93 = scmp.eq.s32.totalorder %s25, 0
      %p94 = por %p92, %p93
      %s95 = ssub.s32 %s19, %s26
      %p96 = scmp.eq.s32.totalorder %s95, 0
      %s98 = sadd.s32 %s97, 1
      %s99 = scalar_select %p96, %s97, %s98
      %p102 = pneg %p96
      %p103 = scmp.eq.s32.totalorder %s19, 1
      %p104 = por %p102, %p103
      %p105 = scmp.ne.s32.totalorder %s97, %s100
      %p106 = scmp.eq.s32.totalorder %s19, 0
      %p107 = por %p105, %p106
      %p108 = scmp.ne.s32.totalorder %s97, %s100
      %p109 = scmp.eq.s32.totalorder %s24, 1
      %p110 = por %p108, %p109
      %p111 = scmp.ne.s32.totalorder %s100, %s101
      %p112 = scmp.eq.s32.totalorder %s24, 0
      %p113 = por %p111, %p112
      %p114 = scmp.ne.s32.totalorder %s100, %s101
      %p115 = scmp.eq.s32.totalorder %s25, 1
      %p116 = por %p114, %p115
      %p118 = scmp.ne.s32.totalorder %s101, %s117
      %p119 = scmp.eq.s32.totalorder %s25, 0
      %p120 = por %p118, %p119
      %p121 = scmp.le.s32.totalorder 1, %s19
      %p122 = scmp.lt.s32.totalorder %s19, 3
      %p123 = pnand %p121, %p122
      %p124 = pneg %p123
      // Predicated region
      $region9: #{tpu_custom_call.1} parent=5 // pred_check
        _
      $region10: #{tpu_custom_call.1} parent=5 // pred_check_branch
        %126 = sbr.rel (%p123) target = $region12
      $region11: #{tpu_custom_call.1} parent=5 // pred_region
        %s127 = ssub.s32 %s19, 1
        // Predicated region
        $region13: #{tpu_custom_call.1} parent=11 // pred_check
          %p128 = pneg %p66
        $region14: #{tpu_custom_call.1} parent=11 // pred_check_branch
          %130 = sbr.rel (%p128) target = $region16
        $region15: #{tpu_custom_call.1} parent=11 // pred_region
          _
        $region16: #{tpu_custom_call.1} parent=11 // pred_fallthru
          _
        // Predicated region
        $region17: #{tpu_custom_call.1} parent=11 // pred_check
          %p131 = pneg %p87
        $region18: #{tpu_custom_call.1} parent=11 // pred_check_branch
          %133 = sbr.rel (%p131) target = $region20
        $region19: #{tpu_custom_call.1} parent=11 // pred_region
          _
        $region20: #{tpu_custom_call.1} parent=11 // pred_fallthru
          _
      $region12: #{tpu_custom_call.1} parent=5 // pred_fallthru
        _
      %p134 = scmp.lt.s32.totalorder %s19, 2
      // Predicated region
      $region21: #{tpu_custom_call.1} parent=5 // pred_check
        %p135 = pneg %p134
      $region22: #{tpu_custom_call.1} parent=5 // pred_check_branch
        %137 = sbr.rel (%p135) target = $region24
      $region23: #{tpu_custom_call.1} parent=5 // pred_region
        // Predicated region
        $region25: #{tpu_custom_call.1} parent=23 // pred_check
          %p138 = pneg %p39
        $region26: #{tpu_custom_call.1} parent=23 // pred_check_branch
          %140 = sbr.rel (%p138) target = $region28
        $region27: #{tpu_custom_call.1} parent=23 // pred_region
          %p141 = scmp.lt.s32.totalorder %s19, 1
          %s142 = scalar_select %p141, %s19, 1
          %s143 = smul.addr %s142, 2
          %s144 = smul.addr %s143, 8
          %s145 = scalar_lea.vmem %s1, %s144
        $region28: #{tpu_custom_call.1} parent=23 // pred_fallthru
          _
      $region24: #{tpu_custom_call.1} parent=5 // pred_fallthru
        _
      %p146 = scmp.le.s32.totalorder 1, %s19
      %p147 = scmp.lt.s32.totalorder %s19, 3
      %p148 = pnand %p146, %p147
      %p149 = pneg %p148
      // Predicated region
      $region29: #{tpu_custom_call.1} parent=5 // pred_check
        _
      $region30: #{tpu_custom_call.1} parent=5 // pred_check_branch
        %151 = sbr.rel (%p148) target = $region32
      $region31: #{tpu_custom_call.1} parent=5 // pred_region
        %s152 = ssub.s32 %s19, 1
        %p153 = scmp.lt.s32.totalorder %s24, 1
        %s154 = scalar_select %p153, %s24, 1
        %s155 = smul.addr %s154, 2
        %s156 = smul.addr %s155, 8
        %s157 = scalar_lea.vmem %s1, %s156
        %p158 = pneg %p45
        %p159 = pneg %p42
        %p160 = pneg %p66
        %p161 = pneg %p63
        %p162 = pneg %p87
        %p163 = pneg %p84
        %p164 = pneg %p113
        %p165 = pneg %p110
        %s166 = sand.u32 %s100, 1
        %s167 = scalar_lea.sflag [#allocation5], %s166
        %s168 = sand.u32 %s100, 1
        %s169 = smul.addr %s168, 8
        %s170 = scalar_lea.vmem [#allocation4], %s169
        %p171 = scmp.lt.s32.totalorder %s24, 1
        %s172 = scalar_select %p171, %s24, 1
        %s173 = smul.addr %s172, 2
        %s174 = smul.addr %s173, 8
        %s175 = scalar_lea.vmem %s1, %s174
        %v176 = vlaneseq
        %v177 = vshrl.u32 %v176, 7
        %v178 = vadd.s32 %v177, 8
        %v179 = vlaneseq
        %v180 = vand.u32 %v179, 127
        %vm181 = vcmp.ge.s32.totalorder %v180, 8
        %v182 = vsel %vm181, 1, 0
        %v183 = vmul.u32 %v177, 2
        %v184 = vmul.u32 %v178, 2
        %v185 = vadd.s32 %v183, %v182
        %v186 = vadd.s32 %v184, %v182
        %p187 = scmp.lt.s32.totalorder %s24, 1
        %s188 = scalar_select %p187, %s24, 1
        %s189 = sld [smem:[#allocation3 + %s188]]
        %v190 = vld [vmem:[%s175] sm:$0xff]
        %v191 = vld [vmem:[%s175 + $0x8] sm:$0x1]
        %v192 = vstv %s189
        %vm193 = vcmp.lt.s32.totalorder %v185, %v192
        %vm194 = vcmp.lt.s32.totalorder %v186, %v192
        %v195 = vsel %vm193, %v190, 0.0
        %v196 = vsel %vm194, %v191, 0.0
        %v197 = vld [vmem:[%s2] sm:$0xff]
        %v198 = vld [vmem:[%s2 + $0x8] sm:$0xff]
        %s199 = scalar_lea.vmem %s2, 16
        %v200 = vld [vmem:[%s199] sm:$0xff]
        %v201 = vld [vmem:[%s199 + $0x8] sm:$0xff]
        %vm204 = vcmask 1046528
        %v205 = vrot.slane %v195, 1
        %v206 = vrot.slane %v196, 1
        %v207 = vsel %vm204, %v205, %v206
        %vm208 = vcmask 130048
        %v209 = vsel %vm208, %v207, 0
        %211 = vmatprep.subr.mxu0 0.0
        %212 = vmatpush1.msra.mxu0 %v200
        %213 = vmatprep.subr.mxu0 0.0
        %214 = vmatpush1.msra.mxu0 %v201
        %215 = vmatprep.subr.mxu0 0.0
        %216 = vmatpush1.msra.mxu0 0.0
        %217 = vmatprep.subr.mxu0 0.0
        %218 = vmatpush1.msra.mxu0 0.0
        %219 = vmatprep.subr.mxu0 0.0
        %220 = vmatpush1.msra.mxu0 0.0
        %221 = vmatprep.subr.mxu0 0.0
        %222 = vmatpush1.msra.mxu0 0.0
        %223 = vmatprep.subr.mxu0 0.0
        %224 = vmatpush1.msra.mxu0 0.0
        %225 = vmatprep.subr.mxu0 0.0
        %226 = vmatpush1.msra.mxu0 0.0
        %227 = vmatprep.subr.mxu0 0.0
        %228 = vmatpush1.msra.mxu0 0.0
        %229 = vmatprep.subr.mxu0 0.0
        %230 = vmatpush1.msra.mxu0 0.0
        %231 = vmatprep.subr.mxu0 0.0
        %232 = vmatpush1.msra.mxu0 0.0
        %233 = vmatprep.subr.mxu0 0.0
        %234 = vmatpush1.msra.mxu0 0.0
        %235 = vmatprep.subr.mxu0 0.0
        %236 = vmatpush1.msra.mxu0 0.0
        %237 = vmatprep.subr.mxu0 0.0
        %238 = vmatpush1.msra.mxu0 0.0
        %239 = vmatprep.subr.mxu0 0.0
        %240 = vmatpush1.msra.mxu0 0.0
        %241 = vmatprep.subr.mxu0 0.0
        %242 = vmatpush1.msra.mxu0 0.0
        %243 = vmatprep.subr.mxu0 0.0
        %244 = vmatpush1.msra.mxu0 0.0
        %245 = vmatprep.subr.mxu0 0.0
        %246 = vmatpush1.msra.mxu0 0.0
        %247 = vmatprep.subr.mxu0 0.0
        %248 = vmatpush1.msra.mxu0 0.0
        %249 = vmatprep.subr.mxu0 0.0
        %250 = vmatpush1.msra.mxu0 0.0
        %251 = vmatprep.subr.mxu0 0.0
        %252 = vmatpush1.msra.mxu0 0.0
        %253 = vmatprep.subr.mxu0 0.0
        %254 = vmatpush1.msra.mxu0 0.0
        %255 = vmatprep.subr.mxu0 0.0
        %256 = vmatpush1.msra.mxu0 0.0
        %257 = vmatprep.subr.mxu0 0.0
        %258 = vmatpush1.msra.mxu0 0.0
        %259 = vmatprep.subr.mxu0 0.0
        %260 = vmatpush1.msra.mxu0 0.0
        %261 = vmatprep.subr.mxu0 0.0
        %262 = vmatpush1.msra.mxu0 0.0
        %263 = vmatprep.subr.mxu0 0.0
        %264 = vmatpush1.msra.mxu0 0.0
        %265 = vmatprep.subr.mxu0 0.0
        %266 = vmatpush1.msra.mxu0 0.0
        %267 = vmatprep.subr.mxu0 0.0
        %268 = vmatpush1.msra.mxu0 0.0
        %269 = vmatprep.subr.mxu0 0.0
        %270 = vmatpush1.msra.mxu0 0.0
        %271 = vmatprep.subr.mxu0 0.0
        %272 = vmatpush1.msra.mxu0 0.0
        %273 = vmatprep.subr.mxu0 0.0
        %274 = vmatpush1.msra.mxu0 0.0
        %275 = vmatprep.mubr.f32.mxu0 0.0
        %276 = vmatmul.mubr.f32.gmra.mrb[0].mxu0 %v209
        %v277 = vpop.f32.mrb[0].mxu0
        %v278 = vadd.f32 0.0, %v277
        %v279 = vpop.f32.mrb[0].mxu0
        %280 = vdwg.mxu0
        %v281 = vsel %vm208, %v195, 0
        %283 = vmatprep.subr.mxu0 0.0
        %284 = vmatpush1.msra.mxu0 %v197
        %285 = vmatprep.subr.mxu0 0.0
        %286 = vmatpush1.msra.mxu0 %v198
        %287 = vmatprep.subr.mxu0 0.0
        %288 = vmatpush1.msra.mxu0 0.0
        %289 = vmatprep.subr.mxu0 0.0
        %290 = vmatpush1.msra.mxu0 0.0
        %291 = vmatprep.subr.mxu0 0.0
        %292 = vmatpush1.msra.mxu0 0.0
        %293 = vmatprep.subr.mxu0 0.0
        %294 = vmatpush1.msra.mxu0 0.0
        %295 = vmatprep.subr.mxu0 0.0
        %296 = vmatpush1.msra.mxu0 0.0
        %297 = vmatprep.subr.mxu0 0.0
        %298 = vmatpush1.msra.mxu0 0.0
        %299 = vmatprep.subr.mxu0 0.0
        %300 = vmatpush1.msra.mxu0 0.0
        %301 = vmatprep.subr.mxu0 0.0
        %302 = vmatpush1.msra.mxu0 0.0
        %303 = vmatprep.subr.mxu0 0.0
        %304 = vmatpush1.msra.mxu0 0.0
        %305 = vmatprep.subr.mxu0 0.0
        %306 = vmatpush1.msra.mxu0 0.0
        %307 = vmatprep.subr.mxu0 0.0
        %308 = vmatpush1.msra.mxu0 0.0
        %309 = vmatprep.subr.mxu0 0.0
        %310 = vmatpush1.msra.mxu0 0.0
        %311 = vmatprep.subr.mxu0 0.0
        %312 = vmatpush1.msra.mxu0 0.0
        %313 = vmatprep.subr.mxu0 0.0
        %314 = vmatpush1.msra.mxu0 0.0
        %315 = vmatprep.subr.mxu0 0.0
        %316 = vmatpush1.msra.mxu0 0.0
        %317 = vmatprep.subr.mxu0 0.0
        %318 = vmatpush1.msra.mxu0 0.0
        %319 = vmatprep.subr.mxu0 0.0
        %320 = vmatpush1.msra.mxu0 0.0
        %321 = vmatprep.subr.mxu0 0.0
        %322 = vmatpush1.msra.mxu0 0.0
        %323 = vmatprep.subr.mxu0 0.0
        %324 = vmatpush1.msra.mxu0 0.0
        %325 = vmatprep.subr.mxu0 0.0
        %326 = vmatpush1.msra.mxu0 0.0
        %327 = vmatprep.subr.mxu0 0.0
        %328 = vmatpush1.msra.mxu0 0.0
        %329 = vmatprep.subr.mxu0 0.0
        %330 = vmatpush1.msra.mxu0 0.0
        %331 = vmatprep.subr.mxu0 0.0
        %332 = vmatpush1.msra.mxu0 0.0
        %333 = vmatprep.subr.mxu0 0.0
        %334 = vmatpush1.msra.mxu0 0.0
        %335 = vmatprep.subr.mxu0 0.0
        %336 = vmatpush1.msra.mxu0 0.0
        %337 = vmatprep.subr.mxu0 0.0
        %338 = vmatpush1.msra.mxu0 0.0
        %339 = vmatprep.subr.mxu0 0.0
        %340 = vmatpush1.msra.mxu0 0.0
        %341 = vmatprep.subr.mxu0 0.0
        %342 = vmatpush1.msra.mxu0 0.0
        %343 = vmatprep.subr.mxu0 0.0
        %344 = vmatpush1.msra.mxu0 0.0
        %345 = vmatprep.subr.mxu0 0.0
        %346 = vmatpush1.msra.mxu0 0.0
        %347 = vmatprep.mubr.f32.mxu0 0.0
        %348 = vmatmul.mubr.f32.gmra.mrb[0].mxu0 %v281
        %v349 = vpop.f32.mrb[0].mxu0
        %v350 = vadd.f32 %v278, %v349
        %v351 = vpop.f32.mrb[0].mxu0
        %352 = vdwg.mxu0
        %v353 = vld [vmem:[%s3] sm:$0x1]
        %v355 = vlaneseq
        %v356 = vshrl.u32 %v355, 7
        %v357 = vsub.s32 0, %v356
        %v358 = vrot.slane %v353, %v357
        %v360 = vadd.f32 %v350, %v358
        %vm361 = vcmask 129024
        %362 = vst.msk [vmem:[%s170] sm:$0x7f] %vm361, %v360
        %vm363 = vcmask 122880
        %364 = vst.msk [vmem:[%s170 + $0x7] sm:$0x1] %vm363, 0.0
        %s365 = sand.u32 %s100, 1
        %s366 = scalar_lea.sflag [#allocation5], %s365
        %s367 = sand.u32 %s100, 1
        %s368 = smul.addr %s367, 8
        %s369 = scalar_lea.vmem [#allocation4], %s368
        // Predicated region
        $region33: #{tpu_custom_call.1} parent=31 // pred_check
          %p370 = pneg %p110
        $region34: #{tpu_custom_call.1} parent=31 // pred_check_branch
          %372 = sbr.rel (%p370) target = $region36
        $region35: #{tpu_custom_call.1} parent=31 // pred_region
          %s374 = ssub.s32 128, 128
          %375 = vsyncadd %s366, %s374
          %s376 = smul.addr %s24, 128
          %s377 = scalar_lea.hbm %s4, %s376
          %s379 = sshll.u32 %s369, 4
          %s380 = int_to_ptr.vmem [resolvable:$true] %s379
          %382 = dma.vmem_to_hbm [thread:$0]  %s380, 128, %s377, %s366
        $region36: #{tpu_custom_call.1} parent=31 // pred_fallthru
          _
      $region32: #{tpu_custom_call.1} parent=5 // pred_fallthru
        _
      %p383 = scmp.le.s32.totalorder 2, %s19
      // Predicated region
      $region37: #{tpu_custom_call.1} parent=5 // pred_check
        %p384 = pneg %p383
      $region38: #{tpu_custom_call.1} parent=5 // pred_check_branch
        %386 = sbr.rel (%p384) target = $region40
      $region39: #{tpu_custom_call.1} parent=5 // pred_region
        %s387 = ssub.s32 %s19, 2
        // Predicated region
        $region41: #{tpu_custom_call.1} parent=39 // pred_check
          %p388 = pneg %p116
        $region42: #{tpu_custom_call.1} parent=39 // pred_check_branch
          %390 = sbr.rel (%p388) target = $region44
        $region43: #{tpu_custom_call.1} parent=39 // pred_region
          %s391 = sand.u32 %s101, 1
          %s392 = scalar_lea.sflag [#allocation5], %s391
          %s393 = sand.u32 %s101, 1
          %s394 = smul.addr %s393, 8
          %s395 = scalar_lea.vmem [#allocation4], %s394
          %396 = dma.done %s392, 128
        $region44: #{tpu_custom_call.1} parent=39 // pred_fallthru
          _
      $region40: #{tpu_custom_call.1} parent=5 // pred_fallthru
        _
    $region6: #{tpu_custom_call.1} parent=1 // loop_footer
      %s23 = sadd.s32 1, %s19
    $region7: #{tpu_custom_call.1} parent=1 // loop_footer_branch
      %18 = sbr.rel target = $region3
    $region8: #{tpu_custom_call.1} parent=1 // loop_exit
      _
    %397 = vsyncpa [#allocation5], 1
    %s398 = scalar_lea.sflag [#allocation5], 1
    %399 = vsyncpa %s398, 1

</llo_original>
